<compile_context>
chip_gen: v7x
topology: tpu7x:2x2x1
jax: 0.10.0
libtpu: 0.0.40
codegen_flags: <defaults>
</compile_context>

<pallas_src>
import jax
import jax.numpy as jnp
from jax.experimental import pallas as pl
from jax.experimental.pallas import tpu as pltpu


def _round_up(x, m):
    return ((x + m - 1) // m) * m


def _conv1d_im2col_kernel(xm_ref, xh_ref, w_ref, o_ref):
    """One (batch-tile, seq-tile) per grid step.

    xm_ref: (TB, TILE_S, H)    -- main input rows of this tile (pre-padded coords)
    xh_ref: (TB, HALO, H)      -- right halo rows (HALO >= 2*pad, multiple of 8)
    w_ref : (K*H, Ho_p)        -- im2col weight [tap*in_ch, out_ch (+ lane pad)]
    o_ref : (TB, TILE_S, Ho_p) -- output tile
    """
    tb, t, h = xm_ref.shape
    kh = w_ref.shape[0]
    ho = o_ref.shape[-1]
    ktaps = kh // h

    # Full window for this tile: (TB, TILE_S + HALO, H).
    win = jnp.concatenate([xm_ref[...], xh_ref[...]], axis=1)
    # im2col: concat the K shifted views along the lane axis -> (TB, TILE_S, K*H).
    cols = jnp.concatenate([win[:, j:j + t, :] for j in range(ktaps)], axis=-1)
    # Fold batch into M: a single (TB*TILE_S, K*H) @ (K*H, Ho_p) MXU matmul,
    # f32 accumulation regardless of input dtype.  No scratch accumulator needed.
    y = jnp.dot(cols.reshape(tb * t, kh), w_ref[...],
                preferred_element_type=jnp.float32)
    o_ref[...] = y.reshape(tb, t, ho).astype(o_ref.dtype)


def cnn_forward(x, weight, *, tile_s=None, tile_b=None,
                compute_dtype=jnp.float32, pad_out_lanes=True):
    """x: (B, S, H) float32; weight: (H_out, H_in, K) (PyTorch Conv1d layout).

    Returns (B, S, H_out) — matches CNN.forward(x) of the PyTorch module.
    """
    B, S, H = x.shape
    H_out, H_in, K = weight.shape
    assert H_in == H, "channel mismatch"
    # Even K with pad=(K-1)//2 is not a symmetric 'same' conv and previously caused
    # an (unchecked) out-of-bounds VMEM read — reject it explicitly.
    assert K % 2 == 1, "kernel_size must be odd for 'same' padding"
    pad = (K - 1) // 2

    # ---- tiling --------------------------------------------------------------
    halo = _round_up(max(2 * pad, 1), 8)            # right-halo rows, sublane aligned
    if tile_s is None:
        tile_s = min(_round_up(S, 8), 256)          # modest default, fits VMEM easily
    tile_s = _round_up(tile_s, halo)                # halo block index (i+1)*T/halo must be int
    n_s = -(-S // tile_s)                           # number of sequence tiles
    if tile_b is None:
        tile_b = B                                  # fold the whole batch into M by default
    assert B % tile_b == 0
    n_b = B // tile_b

    # ---- wrapper-side layout / padding (glue) --------------------------------
    # Pre-pad the sequence: `pad` zeros on the left ('same' conv) and enough zeros
    # on the right to cover tile round-up plus the last tile's halo block.
    # TODO(synk): this jnp.pad is one extra HBM round-trip of the input; it could be
    # removed with in-kernel halo masking or allow_input_fusion.
    L = n_s * tile_s + halo
    x_pad = jnp.pad(x, ((0, 0), (pad, L - pad - S), (0, 0)))

    # Weight -> im2col layout (K*H_in, H_out); lane-pad the output channels to a
    # multiple of 128 (when small) so in-kernel stores are full unmasked vst.
    w_kio = jnp.transpose(weight, (2, 1, 0)).reshape(K * H_in, H_out)
    Ho_p = _round_up(H_out, 128) if (pad_out_lanes and H_out % 128 != 0) else H_out
    if Ho_p != H_out:
        w_kio = jnp.pad(w_kio, ((0, 0), (0, Ho_p - H_out)))

    # Optional reduced-precision MXU inputs (v6e/v7x); accumulation stays f32.
    x_pad = x_pad.astype(compute_dtype)
    w_kio = w_kio.astype(compute_dtype)

    out = pl.pallas_call(
        _conv1d_im2col_kernel,
        out_shape=jax.ShapeDtypeStruct((B, n_s * tile_s, Ho_p), x.dtype),
        grid_spec=pltpu.PrefetchScalarGridSpec(
            num_scalar_prefetch=0,
            grid=(n_b, n_s),
            in_specs=[
                # main rows of the tile: [s*TILE_S, s*TILE_S + TILE_S)
                pl.BlockSpec((tile_b, tile_s, H), lambda b, s: (b, s, 0)),
                # right halo: [(s+1)*TILE_S, (s+1)*TILE_S + halo)
                pl.BlockSpec((tile_b, halo, H),
                             lambda b, s: (b, (s + 1) * (tile_s // halo), 0)),
                # weight: constant-indexed, stays resident in VMEM across the grid.
                pl.BlockSpec((K * H_in, Ho_p), lambda b, s: (0, 0)),
            ],
            out_specs=pl.BlockSpec((tile_b, tile_s, Ho_p), lambda b, s: (b, s, 0)),
        ),
        compiler_params=pltpu.CompilerParams(
            # Both grid axes write disjoint output tiles -> shard across megacore TCs.
            dimension_semantics=("parallel", "parallel"),
            # Explicit scoped-VMEM budget; safe on v7x (64 MiB physical) and v5e/v6e.
            vmem_limit_bytes=32 * 1024 * 1024,
        ),
    )(x_pad, x_pad, w_kio)

    return out[:, :S, :H_out]


def _reference_conv(x, weight):
    """Pure-JAX reference identical to PyTorch Conv1d(bias=False, padding=pad) on x.transpose."""
    K = weight.shape[2]
    pad = (K - 1) // 2
    x_nch = jnp.transpose(x, (0, 2, 1))                        # (B, H, S)
    y = jax.lax.conv_general_dilated(
        x_nch, weight,
        window_strides=(1,), padding=[(pad, pad)],
        dimension_numbers=("NCH", "OIH", "NCH"))
    return jnp.transpose(y, (0, 2, 1))                         # (B, S, H)


if __name__ == "__main__":
    # config = {'hidden_size': 32, 'kernel_size': 3}
    B, S, H, K = 2, 8, 32, 3

    key = jax.random.PRNGKey(0)
    kx, kw = jax.random.split(key)
    x = jax.random.normal(kx, (B, S, H), dtype=jnp.float32)
    # Deterministic Conv1d weight, PyTorch layout (out_ch, in_ch, kernel_size).
    fan_in = H * K
    weight = jax.random.uniform(kw, (H, H, K), dtype=jnp.float32,
                                minval=-1.0, maxval=1.0) / jnp.sqrt(fan_in)

    ref = _reference_conv(x, weight)

    # f32 path: B folded into M, single grid step, one im2col MXU matmul.
    out = jax.block_until_ready(cnn_forward(x, weight))
    assert out.shape == (B, S, H)
    assert jnp.allclose(out, ref, atol=1e-3, rtol=1e-3), "f32 mismatch vs reference conv"

    # bf16 MXU-input path (v6e/v7x): f32 accumulation, looser tolerance.
    out_bf16 = jax.block_until_ready(cnn_forward(x, weight, compute_dtype=jnp.bfloat16))
    assert out_bf16.shape == (B, S, H)
    assert jnp.allclose(out_bf16, ref, atol=5e-2, rtol=5e-2), "bf16 mismatch vs reference conv"

    # Multi-tile sequence path: exercises the halo'd S tiling / 2-D parallel grid.
    S2 = 64
    x2 = jax.random.normal(jax.random.PRNGKey(1), (B, S2, H), dtype=jnp.float32)
    out2 = jax.block_until_ready(cnn_forward(x2, weight, tile_s=16))
    assert out2.shape == (B, S2, H)
    assert jnp.allclose(out2, _reference_conv(x2, weight), atol=1e-3, rtol=1e-3), \
        "tiled-S mismatch vs reference conv"

    print("KERNEL_OK")
</pallas_src>

<mosaic_0001>
module attributes {stable_mosaic.version = 11 : i64} {
  func.func @_conv1d_im2col_kernel(%arg0: i32, %arg1: i32, %arg2: memref<2x8x32xf32, #tpu.memory_space<vmem>>, %arg3: memref<2x8x32xf32, #tpu.memory_space<vmem>>, %arg4: memref<96x128xf32, #tpu.memory_space<vmem>>, %arg5: memref<2x8x128xf32, #tpu.memory_space<vmem>>) attributes {dimension_semantics = [#tpu.dimension_semantics<parallel>, #tpu.dimension_semantics<parallel>], iteration_bounds = array<i64: 1, 1>, scalar_prefetch = 0 : i64, scratch_operands = 0 : i64, tpu.core_type = #tpu.core_type<tc>, window_params = [{transform_indices = @transform_0, window_bounds = array<i64: 2, 8, 32>}, {transform_indices = @transform_1, window_bounds = array<i64: 2, 8, 32>}, {pipeline_mode = #tpu.pipeline_mode<synchronous>, transform_indices = @transform_2, window_bounds = array<i64: 96, 128>}, {transform_indices = @transform_3, window_bounds = array<i64: 2, 8, 128>}]} {
    %c0 = arith.constant 0 : index
    %c0_0 = arith.constant 0 : index
    %c0_1 = arith.constant 0 : index
    %0 = vector.load %arg2[%c0, %c0_0, %c0_1] : memref<2x8x32xf32, #tpu.memory_space<vmem>>, vector<2x8x32xf32>
    %c0_2 = arith.constant 0 : index
    %c0_3 = arith.constant 0 : index
    %c0_4 = arith.constant 0 : index
    %1 = vector.load %arg3[%c0_2, %c0_3, %c0_4] : memref<2x8x32xf32, #tpu.memory_space<vmem>>, vector<2x8x32xf32>
    %2 = tpu.concatenate %0, %1 in 1 : vector<2x8x32xf32>, vector<2x8x32xf32> -> vector<2x16x32xf32>
    %3 = vector.extract_strided_slice %2 {offsets = [0, 0, 0], sizes = [2, 8, 32], strides = [1, 1, 1]} : vector<2x16x32xf32> to vector<2x8x32xf32>
    %4 = vector.extract_strided_slice %2 {offsets = [0, 1, 0], sizes = [2, 8, 32], strides = [1, 1, 1]} : vector<2x16x32xf32> to vector<2x8x32xf32>
    %5 = vector.extract_strided_slice %2 {offsets = [0, 2, 0], sizes = [2, 8, 32], strides = [1, 1, 1]} : vector<2x16x32xf32> to vector<2x8x32xf32>
    %6 = tpu.concatenate %3, %4, %5 in 2 : vector<2x8x32xf32>, vector<2x8x32xf32>, vector<2x8x32xf32> -> vector<2x8x96xf32>
    %7 = vector.shape_cast %6 : vector<2x8x96xf32> to vector<16x96xf32>
    %c0_5 = arith.constant 0 : index
    %c0_6 = arith.constant 0 : index
    %8 = vector.load %arg4[%c0_5, %c0_6] : memref<96x128xf32, #tpu.memory_space<vmem>>, vector<96x128xf32>
    %cst = arith.constant dense<0.000000e+00> : vector<16x128xf32>
    %9 = tpu.matmul %7, %8, %cst {dimension_numbers = #tpu.dot_dimension_numbers<[1], [0], [0], [1], [0, 0, 1, 1], [], []>} : vector<16x96xf32>, vector<96x128xf32>, vector<16x128xf32> -> vector<16x128xf32>
    %10 = vector.shape_cast %9 : vector<16x128xf32> to vector<2x8x128xf32>
    %c0_7 = arith.constant 0 : index
    %c0_8 = arith.constant 0 : index
    %c0_9 = arith.constant 0 : index
    %11 = vector.load %arg5[%c0_7, %c0_8, %c0_9] : memref<2x8x128xf32, #tpu.memory_space<vmem>>, vector<2x8x128xf32>
    tpu.vector_store %arg5[%c0_7, %c0_8, %c0_9], %10 {strides = array<i32>} : memref<2x8x128xf32, #tpu.memory_space<vmem>>, vector<2x8x128xf32>,
    return
  }
  func.func @transform_0(%arg0: i32, %arg1: i32) -> (i32, i32, i32) {
    %c0_i32 = arith.constant 0 : i32
    %c0_i32_0 = arith.constant 0 : i32
    return %arg0, %arg1, %c0_i32 : i32, i32, i32
  }
  func.func @transform_1(%arg0: i32, %arg1: i32) -> (i32, i32, i32) {
    %c1_i32 = arith.constant 1 : i32
    %0 = arith.addi %arg1, %c1_i32 : i32
    %c1_i32_0 = arith.constant 1 : i32
    %1 = arith.muli %0, %c1_i32_0 : i32
    %c0_i32 = arith.constant 0 : i32
    %c0_i32_1 = arith.constant 0 : i32
    return %arg0, %1, %c0_i32 : i32, i32, i32
  }
  func.func @transform_2(%arg0: i32, %arg1: i32) -> (i32, i32) {
    %c0_i32 = arith.constant 0 : i32
    %c0_i32_0 = arith.constant 0 : i32
    %c0_i32_1 = arith.constant 0 : i32
    return %c0_i32, %c0_i32_0 : i32, i32
  }
  func.func @transform_3(%arg0: i32, %arg1: i32) -> (i32, i32, i32) {
    %c0_i32 = arith.constant 0 : i32
    %c0_i32_0 = arith.constant 0 : i32
    return %arg0, %arg1, %c0_i32 : i32, i32, i32
  }
}

</mosaic_0001>

<llo_original>
// kernel: tpu_custom_call.1
$region0: #{tpu_custom_call.1}
  #allocation0 [shape = 'u32[]', space=smem, size = 0x4, offset = 0x4, fixed_abs, tag = 'smem constant byte address 0x4 - core index']
  #allocation1 [shape = 'u32[144,128]{1,0:T(1,128)}', space=vmem, size = 0x12000, scoped, tag = 'internal scratch']
  %s0 = inlined_call_operand.hbm [shape: f32[2,16,32], index: 0, kind: input, shape index: {}]
  %s1 = inlined_call_operand.hbm [shape: f32[2,16,32], index: 1, kind: input, shape index: {}]
  %s2 = inlined_call_operand.hbm [shape: f32[96,128], index: 2, kind: input, shape index: {}]
  %s3 = inlined_call_operand.hbm [shape: f32[2,8,128], index: 3, kind: output, shape index: {}]
  %s4 = sld [smem:[#allocation0]]
  $region34: #{tpu_custom_call.1} parent=0
    _
  %s6 = ssub.s32 1, %s4
  %s7 = scalar_select 0, %s6, %s4
  $region1: #{tpu_custom_call.1} parent=0
    #allocation2 [shape = 'u8[8192]{0}', space=vmem, size = 0x2000, scoped, tag = 'input window, operand 0, single buffered']
    #allocation3 [shape = 's32[1]{0}', space=sflag, size = 0x4, scoped, tag = 'scoped memory for tpu_custom_call.1']
    #allocation4 [shape = 's32[1]{0}', space=sflag, size = 0x4, scoped, tag = 'scoped memory for tpu_custom_call.1']
    #allocation5 [shape = 'u8[8192]{0}', space=vmem, size = 0x2000, scoped, tag = 'input window, operand 1, single buffered']
    #allocation6 [shape = 's32[1]{0}', space=sflag, size = 0x4, scoped, tag = 'scoped memory for tpu_custom_call.1']
    #allocation7 [shape = 'u8[49152]{0}', space=vmem, size = 0xc000, scoped, tag = 'input window, operand 2, single buffered']
    #allocation8 [shape = 'u8[8192]{0}', space=vmem, size = 0x2000, scoped, tag = 'output window, operand 0, single buffered']
    %8 = vsyncpa [#allocation3], 0
    %9 = vsyncpa [#allocation6], 0
    %10 = vsyncpa [#allocation4], 0
    // Predicated region
    $region2: #{tpu_custom_call.1} parent=1 // pred_check
      _
    $region3: #{tpu_custom_call.1} parent=1 // pred_check_branch
      %12 = sbr.rel (0) target = $region5
    $region4: #{tpu_custom_call.1} parent=1 // pred_region
      %s14 = ssub.s32 256, 256
      %15 = vsyncadd [#allocation3], %s14
      %s16 = sshll.u32 [#allocation2], 4
      %s17 = int_to_ptr.vmem [resolvable:$true] %s16
      %22 = dma.hbm_to_vmem [thread:$0]  %s0, 256, %s17, [#allocation3], 256, 128, 8
    $region5: #{tpu_custom_call.1} parent=1 // pred_fallthru
      _
    // Predicated region
    $region6: #{tpu_custom_call.1} parent=1 // pred_check
      _
    $region7: #{tpu_custom_call.1} parent=1 // pred_check_branch
      %24 = sbr.rel (0) target = $region9
    $region8: #{tpu_custom_call.1} parent=1 // pred_region
      %s25 = sadd.s32 0, 1
      %s27 = ssub.s32 256, 256
      %28 = vsyncadd [#allocation6], %s27
      %s29 = smul.addr %s25, 128
      %s30 = scalar_lea.hbm %s1, %s29
      %s31 = sshll.u32 [#allocation5], 4
      %s32 = int_to_ptr.vmem [resolvable:$true] %s31
      %37 = dma.hbm_to_vmem [thread:$0]  %s30, 256, %s32, [#allocation6], 256, 128, 8
    $region9: #{tpu_custom_call.1} parent=1 // pred_fallthru
      _
    // Predicated region
    $region10: #{tpu_custom_call.1} parent=1 // pred_check
      _
    $region11: #{tpu_custom_call.1} parent=1 // pred_check_branch
      %39 = sbr.rel (0) target = $region13
    $region12: #{tpu_custom_call.1} parent=1 // pred_region
      %s41 = ssub.s32 1536, 1536
      %42 = vsyncadd [#allocation6], %s41
      %s43 = sshll.u32 [#allocation7], 4
      %s44 = int_to_ptr.vmem [resolvable:$true] %s43
      %49 = dma.hbm_to_vmem [thread:$0]  %s2, 1536, %s44, [#allocation6], 128, 128, 8
    $region13: #{tpu_custom_call.1} parent=1 // pred_fallthru
      _
    // Predicated region
    $region14: #{tpu_custom_call.1} parent=1 // pred_check
      _
    $region15: #{tpu_custom_call.1} parent=1 // pred_check_branch
      %51 = sbr.rel (0) target = $region17
    $region16: #{tpu_custom_call.1} parent=1 // pred_region
      %52 = dma.done [#allocation3], 256
    $region17: #{tpu_custom_call.1} parent=1 // pred_fallthru
      _
    // Predicated region
    $region18: #{tpu_custom_call.1} parent=1 // pred_check
      _
    $region19: #{tpu_custom_call.1} parent=1 // pred_check_branch
      %54 = sbr.rel (0) target = $region21
    $region20: #{tpu_custom_call.1} parent=1 // pred_region
      %55 = dma.done [#allocation6], 256
    $region21: #{tpu_custom_call.1} parent=1 // pred_fallthru
      _
    // Predicated region
    $region22: #{tpu_custom_call.1} parent=1 // pred_check
      _
    $region23: #{tpu_custom_call.1} parent=1 // pred_check_branch
      %57 = sbr.rel (0) target = $region25
    $region24: #{tpu_custom_call.1} parent=1 // pred_region
      %58 = dma.done [#allocation6], 1536
    $region25: #{tpu_custom_call.1} parent=1 // pred_fallthru
      _
    %s59 = sadd.s32 0, 1
    %v60 = vld [vmem:[#allocation2] sm:$0xff]
    %v61 = vld [vmem:[#allocation2 + $0x8] sm:$0xff]
    %v62 = vld [vmem:[#allocation5] sm:$0xff]
    %v63 = vld [vmem:[#allocation5 + $0x8] sm:$0xff]
    %vm68 = vcmask 1046528
    %v69 = vrot.slane %v60, 1
    %v70 = vrot.slane %v62, 1
    %v71 = vsel %vm68, %v69, %v70
    %v72 = vrot.slane %v61, 1
    %v73 = vrot.slane %v63, 1
    %v74 = vsel %vm68, %v72, %v73
    %75 = vrot.lane.b32.xlu0 %v71, 32
    %v76 = vpop.permute.xlu0 %75
    %77 = vrot.lane.b32.xlu0 %v74, 32
    %v78 = vpop.permute.xlu0 %77
    %vm81 = vcmask 1045504
    %v82 = vrot.slane %v60, 2
    %v83 = vrot.slane %v62, 2
    %v84 = vsel %vm81, %v82, %v83
    %v85 = vrot.slane %v61, 2
    %v86 = vrot.slane %v63, 2
    %v87 = vsel %vm81, %v85, %v86
    %88 = vrot.lane.b32.xlu0 %v84, 64
    %v89 = vpop.permute.xlu0 %88
    %90 = vrot.lane.b32.xlu0 %v87, 64
    %v91 = vpop.permute.xlu0 %90
    %vm94 = vcmask 261120
    %v95 = vsel %vm94, %v60, %v76
    %v96 = vsel %vm94, %v61, %v78
    %vm97 = vcmask 523264
    %v98 = vsel %vm97, %v95, %v89
    %v99 = vsel %vm97, %v96, %v91
    %v100 = vld [vmem:[#allocation7] sm:$0xff]
    %v101 = vld [vmem:[#allocation7 + $0x8] sm:$0xff]
    %v102 = vld [vmem:[#allocation7 + $0x10] sm:$0xff]
    %v103 = vld [vmem:[#allocation7 + $0x18] sm:$0xff]
    %v104 = vld [vmem:[#allocation7 + $0x20] sm:$0xff]
    %v105 = vld [vmem:[#allocation7 + $0x28] sm:$0xff]
    %v106 = vld [vmem:[#allocation7 + $0x30] sm:$0xff]
    %v107 = vld [vmem:[#allocation7 + $0x38] sm:$0xff]
    %v108 = vld [vmem:[#allocation7 + $0x40] sm:$0xff]
    %v109 = vld [vmem:[#allocation7 + $0x48] sm:$0xff]
    %v110 = vld [vmem:[#allocation7 + $0x50] sm:$0xff]
    %v111 = vld [vmem:[#allocation7 + $0x58] sm:$0xff]
    %vm112 = vcmask 785408
    %v114 = vsel %vm112, %v98, 0
    %v117 = vsel %vm112, %v99, 0
    %119 = vmatprep.subr.mxu0 0.0
    %120 = vmatpush1.msra.mxu0 %v100
    %121 = vmatprep.subr.mxu0 0.0
    %122 = vmatpush1.msra.mxu0 %v101
    %123 = vmatprep.subr.mxu0 0.0
    %124 = vmatpush1.msra.mxu0 %v102
    %125 = vmatprep.subr.mxu0 0.0
    %126 = vmatpush1.msra.mxu0 %v103
    %127 = vmatprep.subr.mxu0 0.0
    %128 = vmatpush1.msra.mxu0 %v104
    %129 = vmatprep.subr.mxu0 0.0
    %130 = vmatpush1.msra.mxu0 %v105
    %131 = vmatprep.subr.mxu0 0.0
    %132 = vmatpush1.msra.mxu0 %v106
    %133 = vmatprep.subr.mxu0 0.0
    %134 = vmatpush1.msra.mxu0 %v107
    %135 = vmatprep.subr.mxu0 0.0
    %136 = vmatpush1.msra.mxu0 %v108
    %137 = vmatprep.subr.mxu0 0.0
    %138 = vmatpush1.msra.mxu0 %v109
    %139 = vmatprep.subr.mxu0 0.0
    %140 = vmatpush1.msra.mxu0 %v110
    %141 = vmatprep.subr.mxu0 0.0
    %142 = vmatpush1.msra.mxu0 %v111
    %143 = vmatprep.subr.mxu0 0.0
    %144 = vmatpush1.msra.mxu0 0.0
    %145 = vmatprep.subr.mxu0 0.0
    %146 = vmatpush1.msra.mxu0 0.0
    %147 = vmatprep.subr.mxu0 0.0
    %148 = vmatpush1.msra.mxu0 0.0
    %149 = vmatprep.subr.mxu0 0.0
    %150 = vmatpush1.msra.mxu0 0.0
    %151 = vmatprep.subr.mxu0 0.0
    %152 = vmatpush1.msra.mxu0 0.0
    %153 = vmatprep.subr.mxu0 0.0
    %154 = vmatpush1.msra.mxu0 0.0
    %155 = vmatprep.subr.mxu0 0.0
    %156 = vmatpush1.msra.mxu0 0.0
    %157 = vmatprep.subr.mxu0 0.0
    %158 = vmatpush1.msra.mxu0 0.0
    %159 = vmatprep.subr.mxu0 0.0
    %160 = vmatpush1.msra.mxu0 0.0
    %161 = vmatprep.subr.mxu0 0.0
    %162 = vmatpush1.msra.mxu0 0.0
    %163 = vmatprep.subr.mxu0 0.0
    %164 = vmatpush1.msra.mxu0 0.0
    %165 = vmatprep.subr.mxu0 0.0
    %166 = vmatpush1.msra.mxu0 0.0
    %167 = vmatprep.subr.mxu0 0.0
    %168 = vmatpush1.msra.mxu0 0.0
    %169 = vmatprep.subr.mxu0 0.0
    %170 = vmatpush1.msra.mxu0 0.0
    %171 = vmatprep.subr.mxu0 0.0
    %172 = vmatpush1.msra.mxu0 0.0
    %173 = vmatprep.subr.mxu0 0.0
    %174 = vmatpush1.msra.mxu0 0.0
    %175 = vmatprep.subr.mxu0 0.0
    %176 = vmatpush1.msra.mxu0 0.0
    %177 = vmatprep.subr.mxu0 0.0
    %178 = vmatpush1.msra.mxu0 0.0
    %179 = vmatprep.subr.mxu0 0.0
    %180 = vmatpush1.msra.mxu0 0.0
    %181 = vmatprep.subr.mxu0 0.0
    %182 = vmatpush1.msra.mxu0 0.0
    %183 = vmatprep.mubr.f32.mxu0 0.0
    %184 = vmatmul.mubr.f32.gmra.mrb[0].mxu0 %v114
    %v185 = vpop.f32.mrb[0].mxu0
    %v186 = vadd.f32 0.0, %v185
    %v187 = vpop.f32.mrb[0].mxu0
    %188 = vmatprep.mubr.f32.mxu0 0.0
    %189 = vmatmul.mubr.f32.gmra.mrb[0].mxu0 %v117
    %v190 = vpop.f32.mrb[0].mxu0
    %v191 = vadd.f32 0.0, %v190
    %v192 = vpop.f32.mrb[0].mxu0
    %193 = vdwg.mxu0
    %194 = vst [vmem:[#allocation8] sm:$0xff] %v186
    %195 = vst [vmem:[#allocation8 + $0x8] sm:$0xff] %v191
    // Predicated region
    $region26: #{tpu_custom_call.1} parent=1 // pred_check
      _
    $region27: #{tpu_custom_call.1} parent=1 // pred_check_branch
      %197 = sbr.rel (0) target = $region29
    $region28: #{tpu_custom_call.1} parent=1 // pred_region
      %s199 = ssub.s32 256, 256
      %200 = vsyncadd [#allocation4], %s199
      %s201 = sshll.u32 [#allocation8], 4
      %s202 = int_to_ptr.vmem [resolvable:$true] %s201
      %207 = dma.vmem_to_hbm [thread:$0]  %s202, 256, %s3, [#allocation4], 128, 128, 8
    $region29: #{tpu_custom_call.1} parent=1 // pred_fallthru
      _
    // Predicated region
    $region30: #{tpu_custom_call.1} parent=1 // pred_check
      _
    $region31: #{tpu_custom_call.1} parent=1 // pred_check_branch
      %209 = sbr.rel (0) target = $region33
    $region32: #{tpu_custom_call.1} parent=1 // pred_region
      %210 = dma.done [#allocation4], 256
    $region33: #{tpu_custom_call.1} parent=1 // pred_fallthru
      _
    %211 = vsyncpa [#allocation3], 1
    %212 = vsyncpa [#allocation6], 1
    %213 = vsyncpa [#allocation4], 1

</llo_original>
